<compile_context>
chip_gen: v7x
topology: tpu7x:2x2x1
jax: 0.10.0
libtpu: 0.0.40
codegen_flags: <defaults>
</compile_context>

<pallas_src>
import jax
import jax.numpy as jnp
from jax.experimental import pallas as pl
from jax.experimental.pallas import tpu as pltpu

_LANES = 128
_SUBLANES = 8
_NEG_LOGIT_PAD = -1e9  # sigmoid(-1e9) == 0.0 exactly in f32


def _round_up(x, m):
    return ((x + m - 1) // m) * m


def _iou_loss_kernel(pred_ref, target_ref, out_ref, inter_acc, total_acc):
    """Grid = (N_blocks, D_blocks); axis 1 is the feature reduction (innermost)."""
    j = pl.program_id(1)

    @pl.when(j == 0)
    def _init():
        inter_acc[...] = jnp.zeros_like(inter_acc)
        total_acc[...] = jnp.zeros_like(total_acc)

    # Native-dtype tiles from HBM; upcast to f32 immediately after the load
    # (v5e has no bf16 VPU/EUP paths) and do all math / accumulation in f32.
    x = pred_ref[...].astype(jnp.float32)        # (block_n, block_d) logits
    t = target_ref[...].astype(jnp.float32)      # (block_n, block_d) targets
    p = jax.nn.sigmoid(x)

    # Lane-first reductions into per-sample (block_n, 1) partial sums.
    inter_acc[...] += jnp.sum(p * t, axis=-1, keepdims=True)
    total_acc[...] += jnp.sum(p + t, axis=-1, keepdims=True)

    @pl.when(j == pl.num_programs(1) - 1)
    def _finalize():
        inter = inter_acc[...]
        union = total_acc[...] - inter
        out_ref[...] = 1.0 - (inter + 1.0) / (union + 1.0)


def _vmem_budget():
    """Per-input tile byte budget and VMEM limit, derived from the chip."""
    try:
        cap = int(pltpu.get_tpu_info().vmem_capacity_bytes)
    except Exception:
        cap = 64 << 20  # conservative (v7x-sized) fallback
    # Use at most ~half of physical VMEM for this kernel, capped at 96 MiB.
    limit = min(max(cap // 2, 16 << 20), 96 << 20)
    # 2 inputs x 2 pipeline buffers must fit comfortably under the limit.
    tile = max(limit // 8, 1 << 20)
    return tile, limit


def _pick_block_n(N):
    """N-block size: multiple of 8 (megacore-friendly) or full extent."""
    if N > 8 and N % 8 == 0:
        return 8
    return N


def _pick_block_d(D, rows_padded, elem_bytes, tile_budget_bytes):
    """Largest 128-multiple block_d whose input tile fits the byte budget."""
    bd = tile_budget_bytes // (rows_padded * elem_bytes)
    bd = max(_LANES, (bd // _LANES) * _LANES)
    bd = min(bd, _round_up(D, _LANES))
    return bd


def iou_loss(pred, target):
    """pred/target: (N, C, H, W). Returns per-sample IoU loss, shape (N,) f32."""
    N, C, H, W = pred.shape
    D = C * H * W

    # Keep native dtypes (bf16 inputs halve HBM traffic); upcast is in-kernel.
    pred2d = pred.reshape(N, D)
    target2d = target.reshape(N, D)
    if target2d.dtype == jnp.bool_:
        target2d = target2d.astype(jnp.int8)

    tile_budget, vmem_limit = _vmem_budget()
    block_n = _pick_block_n(N)
    rows_padded = max(_round_up(block_n, _SUBLANES), _SUBLANES)
    elem_bytes = max(pred2d.dtype.itemsize, target2d.dtype.itemsize)
    block_d = _pick_block_d(D, rows_padded, elem_bytes, tile_budget)

    # Pad the feature axis so block_d divides it.  Logits are padded with a
    # large negative value (sigmoid -> exactly 0) and targets with 0, so the
    # padding contributes nothing to inter or union.
    Dp = _round_up(D, block_d)
    if Dp != D:
        pred2d = jnp.pad(pred2d, ((0, 0), (0, Dp - D)),
                         constant_values=_NEG_LOGIT_PAD)
        target2d = jnp.pad(target2d, ((0, 0), (0, Dp - D)), constant_values=0)

    grid = (N // block_n, Dp // block_d)

    cost = pl.CostEstimate(
        flops=4 * N * D,
        transcendentals=N * D,
        bytes_accessed=N * D * (pred2d.dtype.itemsize + target2d.dtype.itemsize)
        + N * 4,
    )

    out = pl.pallas_call(
        _iou_loss_kernel,
        out_shape=jax.ShapeDtypeStruct((N, 1), jnp.float32),
        grid=grid,
        in_specs=[
            pl.BlockSpec((block_n, block_d), lambda i, j: (i, j)),
            pl.BlockSpec((block_n, block_d), lambda i, j: (i, j)),
        ],
        # Output block is constant along the reduction axis (written only at
        # the final reduction step of each N-block).
        out_specs=pl.BlockSpec((block_n, 1), lambda i, j: (i, 0)),
        scratch_shapes=[
            pltpu.VMEM((block_n, 1), jnp.float32),   # inter accumulator
            pltpu.VMEM((block_n, 1), jnp.float32),   # pred+target accumulator
        ],
        compiler_params=pltpu.CompilerParams(
            dimension_semantics=("parallel", "arbitrary"),
            vmem_limit_bytes=vmem_limit,
        ),
        cost_estimate=cost,
    )(pred2d, target2d)
    return out[:, 0]


def iou_loss_ref(pred, target):
    """Pure-JAX reference mirroring the PyTorch forward."""
    p = jax.nn.sigmoid(pred.astype(jnp.float32))
    t = target.astype(jnp.float32)
    inter = jnp.sum(p * t, axis=(1, 2, 3))
    union = jnp.sum(p + t, axis=(1, 2, 3)) - inter
    return 1.0 - (inter + 1.0) / (union + 1.0)


if __name__ == "__main__":
    key = jax.random.PRNGKey(0)
    k1, k2 = jax.random.split(key)
    N, C, H, W = 2, 4, 16, 16
    pred = jax.random.normal(k1, (N, C, H, W), dtype=jnp.float32)            # logits
    target = (jax.random.uniform(k2, (N, C, H, W)) > 0.5).astype(jnp.float32)

    out = jax.block_until_ready(iou_loss(pred, target))
    ref = iou_loss_ref(pred, target)
    assert out.shape == (N,), out.shape
    assert jnp.allclose(out, ref, rtol=1e-5, atol=1e-5), (out, ref)

    # Also exercise the padding path (D not a multiple of 128) for robustness.
    C2, H2, W2 = 3, 7, 5
    pred_b = jax.random.normal(k1, (N, C2, H2, W2), dtype=jnp.float32)
    target_b = (jax.random.uniform(k2, (N, C2, H2, W2)) > 0.5).astype(jnp.float32)
    out_b = jax.block_until_ready(iou_loss(pred_b, target_b))
    ref_b = iou_loss_ref(pred_b, target_b)
    assert jnp.allclose(out_b, ref_b, rtol=1e-5, atol=1e-5), (out_b, ref_b)

    print("KERNEL_OK")
</pallas_src>

<mosaic_0001>
module attributes {stable_mosaic.version = 11 : i64} {
  func.func @_iou_loss_kernel(%arg0: i32, %arg1: i32, %arg2: memref<2x1024xf32, #tpu.memory_space<vmem>>, %arg3: memref<2x1024xf32, #tpu.memory_space<vmem>>, %arg4: memref<2x1xf32, #tpu.memory_space<vmem>>, %arg5: memref<2x1xf32, #tpu.memory_space<vmem>>, %arg6: memref<2x1xf32, #tpu.memory_space<vmem>>) attributes {dimension_semantics = [#tpu.dimension_semantics<parallel>, #tpu.dimension_semantics<arbitrary>], iteration_bounds = array<i64: 1, 1>, scalar_prefetch = 0 : i64, scratch_operands = 2 : i64, tpu.core_type = #tpu.core_type<tc>, window_params = [{transform_indices = @transform_0, window_bounds = array<i64: 2, 1024>}, {transform_indices = @transform_1, window_bounds = array<i64: 2, 1024>}, {transform_indices = @transform_2, window_bounds = array<i64: 2, 1>}]} {
    %c0_i32 = arith.constant 0 : i32
    %0 = arith.cmpi eq, %arg1, %c0_i32 : i32
    %1 = arith.extui %0 : i1 to i32
    %c0_i32_0 = arith.constant 0 : i32
    %2 = arith.cmpi ne, %1, %c0_i32_0 : i32
    scf.if %2 {
      %cst_16 = arith.constant 0.000000e+00 : f32
      %25 = vector.broadcast %cst_16 : f32 to vector<2x1xf32>
      %c0_17 = arith.constant 0 : index
      %c0_18 = arith.constant 0 : index
      %26 = vector.load %arg5[%c0_17, %c0_18] : memref<2x1xf32, #tpu.memory_space<vmem>>, vector<2x1xf32>
      tpu.vector_store %arg5[%c0_17, %c0_18], %25 {strides = array<i32>} : memref<2x1xf32, #tpu.memory_space<vmem>>, vector<2x1xf32>,
      %cst_19 = arith.constant 0.000000e+00 : f32
      %27 = vector.broadcast %cst_19 : f32 to vector<2x1xf32>
      %c0_20 = arith.constant 0 : index
      %c0_21 = arith.constant 0 : index
      %28 = vector.load %arg6[%c0_20, %c0_21] : memref<2x1xf32, #tpu.memory_space<vmem>>, vector<2x1xf32>
      tpu.vector_store %arg6[%c0_20, %c0_21], %27 {strides = array<i32>} : memref<2x1xf32, #tpu.memory_space<vmem>>, vector<2x1xf32>,
    } else {
    }
    %c0 = arith.constant 0 : index
    %c0_1 = arith.constant 0 : index
    %3 = vector.load %arg2[%c0, %c0_1] : memref<2x1024xf32, #tpu.memory_space<vmem>>, vector<2x1024xf32>
    %c0_2 = arith.constant 0 : index
    %c0_3 = arith.constant 0 : index
    %4 = vector.load %arg3[%c0_2, %c0_3] : memref<2x1024xf32, #tpu.memory_space<vmem>>, vector<2x1024xf32>
    %5 = arith.negf %3 : vector<2x1024xf32>
    %6 = math.exp %5 : vector<2x1024xf32>
    %cst = arith.constant 1.000000e+00 : f32
    %7 = vector.broadcast %cst : f32 to vector<2x1024xf32>
    %8 = arith.addf %7, %6 : vector<2x1024xf32>
    %9 = arith.divf %7, %8 : vector<2x1024xf32>
    %c0_4 = arith.constant 0 : index
    %c0_5 = arith.constant 0 : index
    %10 = vector.load %arg5[%c0_4, %c0_5] : memref<2x1xf32, #tpu.memory_space<vmem>>, vector<2x1xf32>
    %11 = arith.mulf %9, %4 : vector<2x1024xf32>
    %cst_6 = arith.constant dense<0.000000e+00> : vector<2xf32>
    %12 = vector.multi_reduction <add>, %11, %cst_6 [1] : vector<2x1024xf32> to vector<2xf32>
    %13 = vector.shape_cast %12 : vector<2xf32> to vector<2x1xf32>
    %14 = arith.addf %10, %13 : vector<2x1xf32>
    %c0_7 = arith.constant 0 : index
    %c0_8 = arith.constant 0 : index
    %15 = vector.load %arg5[%c0_7, %c0_8] : memref<2x1xf32, #tpu.memory_space<vmem>>, vector<2x1xf32>
    tpu.vector_store %arg5[%c0_7, %c0_8], %14 {strides = array<i32>} : memref<2x1xf32, #tpu.memory_space<vmem>>, vector<2x1xf32>,
    %c0_9 = arith.constant 0 : index
    %c0_10 = arith.constant 0 : index
    %16 = vector.load %arg6[%c0_9, %c0_10] : memref<2x1xf32, #tpu.memory_space<vmem>>, vector<2x1xf32>
    %17 = arith.addf %9, %4 : vector<2x1024xf32>
    %cst_11 = arith.constant dense<0.000000e+00> : vector<2xf32>
    %18 = vector.multi_reduction <add>, %17, %cst_11 [1] : vector<2x1024xf32> to vector<2xf32>
    %19 = vector.shape_cast %18 : vector<2xf32> to vector<2x1xf32>
    %20 = arith.addf %16, %19 : vector<2x1xf32>
    %c0_12 = arith.constant 0 : index
    %c0_13 = arith.constant 0 : index
    %21 = vector.load %arg6[%c0_12, %c0_13] : memref<2x1xf32, #tpu.memory_space<vmem>>, vector<2x1xf32>
    tpu.vector_store %arg6[%c0_12, %c0_13], %20 {strides = array<i32>} : memref<2x1xf32, #tpu.memory_space<vmem>>, vector<2x1xf32>,
    %c0_i32_14 = arith.constant 0 : i32
    %22 = arith.cmpi eq, %arg1, %c0_i32_14 : i32
    %23 = arith.extui %22 : i1 to i32
    %c0_i32_15 = arith.constant 0 : i32
    %24 = arith.cmpi ne, %23, %c0_i32_15 : i32
    scf.if %24 {
      %c0_16 = arith.constant 0 : index
      %c0_17 = arith.constant 0 : index
      %25 = vector.load %arg5[%c0_16, %c0_17] : memref<2x1xf32, #tpu.memory_space<vmem>>, vector<2x1xf32>
      %c0_18 = arith.constant 0 : index
      %c0_19 = arith.constant 0 : index
      %26 = vector.load %arg6[%c0_18, %c0_19] : memref<2x1xf32, #tpu.memory_space<vmem>>, vector<2x1xf32>
      %27 = arith.subf %26, %25 : vector<2x1xf32>
      %cst_20 = arith.constant 1.000000e+00 : f32
      %28 = vector.broadcast %cst_20 : f32 to vector<2x1xf32>
      %29 = arith.addf %25, %28 : vector<2x1xf32>
      %cst_21 = arith.constant 1.000000e+00 : f32
      %30 = vector.broadcast %cst_21 : f32 to vector<2x1xf32>
      %31 = arith.addf %27, %30 : vector<2x1xf32>
      %32 = arith.divf %29, %31 : vector<2x1xf32>
      %cst_22 = arith.constant 1.000000e+00 : f32
      %33 = vector.broadcast %cst_22 : f32 to vector<2x1xf32>
      %34 = arith.subf %33, %32 : vector<2x1xf32>
      %c0_23 = arith.constant 0 : index
      %c0_24 = arith.constant 0 : index
      %35 = vector.load %arg4[%c0_23, %c0_24] : memref<2x1xf32, #tpu.memory_space<vmem>>, vector<2x1xf32>
      tpu.vector_store %arg4[%c0_23, %c0_24], %34 {strides = array<i32>} : memref<2x1xf32, #tpu.memory_space<vmem>>, vector<2x1xf32>,
    } else {
    }
    return
  }
  func.func @transform_0(%arg0: i32, %arg1: i32) -> (i32, i32) {
    %c0_i32 = arith.constant 0 : i32
    return %arg0, %arg1 : i32, i32
  }
  func.func @transform_1(%arg0: i32, %arg1: i32) -> (i32, i32) {
    %c0_i32 = arith.constant 0 : i32
    return %arg0, %arg1 : i32, i32
  }
  func.func @transform_2(%arg0: i32, %arg1: i32) -> (i32, i32) {
    %c0_i32 = arith.constant 0 : i32
    %c0_i32_0 = arith.constant 0 : i32
    return %arg0, %c0_i32 : i32, i32
  }
}

</mosaic_0001>

<llo_original>
// kernel: tpu_custom_call.1
$region0: #{tpu_custom_call.1}
  #allocation0 [shape = 'u32[]', space=smem, size = 0x4, offset = 0x4, fixed_abs, tag = 'smem constant byte address 0x4 - core index']
  #allocation1 [shape = 'u32[144,128]{1,0:T(1,128)}', space=vmem, size = 0x12000, scoped, tag = 'internal scratch']
  #allocation2 [shape = 'f32[2,1]{1,0:T(2,128)}', space=vmem, size = 0x400, scoped, tag = 'scratch operand']
  #allocation3 [shape = 'f32[2,1]{1,0:T(2,128)}', space=vmem, size = 0x400, scoped, tag = 'scratch operand']
  %s0 = inlined_call_operand.hbm [shape: f32[2,1024], index: 0, kind: input, shape index: {}]
  %s1 = inlined_call_operand.hbm [shape: f32[2,1024], index: 1, kind: input, shape index: {}]
  %s2 = inlined_call_operand.vmem [shape: f32[2,1], index: 2, kind: output, shape index: {}]
  %s3 = sld [smem:[#allocation0]]
  $region34: #{tpu_custom_call.1} parent=0
    _
  %s5 = ssub.s32 1, %s3
  %s6 = scalar_select 0, %s5, %s3
  $region1: #{tpu_custom_call.1} parent=0
    #allocation4 [shape = 'u8[8192]{0}', space=vmem, size = 0x2000, scoped, tag = 'input window, operand 0, single buffered']
    #allocation5 [shape = 's32[1]{0}', space=sflag, size = 0x4, scoped, tag = 'scoped memory for tpu_custom_call.1']
    #allocation6 [shape = 'u8[8192]{0}', space=vmem, size = 0x2000, scoped, tag = 'input window, operand 1, single buffered']
    #allocation7 [shape = 's32[1]{0}', space=sflag, size = 0x4, scoped, tag = 'scoped memory for tpu_custom_call.1']
    %7 = vsyncpa [#allocation5], 0
    %8 = vsyncpa [#allocation7], 0
    // Predicated region
    $region2: #{tpu_custom_call.1} parent=1 // pred_check
      _
    $region3: #{tpu_custom_call.1} parent=1 // pred_check_branch
      %10 = sbr.rel (0) target = $region5
    $region4: #{tpu_custom_call.1} parent=1 // pred_region
      %s12 = ssub.s32 256, 256
      %13 = vsyncadd [#allocation5], %s12
      %s15 = sshll.u32 [#allocation4], 4
      %s16 = int_to_ptr.vmem [resolvable:$true] %s15
      %18 = dma.hbm_to_vmem [thread:$0]  %s0, 256, %s16, [#allocation5]
    $region5: #{tpu_custom_call.1} parent=1 // pred_fallthru
      _
    // Predicated region
    $region6: #{tpu_custom_call.1} parent=1 // pred_check
      _
    $region7: #{tpu_custom_call.1} parent=1 // pred_check_branch
      %20 = sbr.rel (0) target = $region9
    $region8: #{tpu_custom_call.1} parent=1 // pred_region
      %s22 = ssub.s32 256, 256
      %23 = vsyncadd [#allocation7], %s22
      %s25 = sshll.u32 [#allocation6], 4
      %s26 = int_to_ptr.vmem [resolvable:$true] %s25
      %28 = dma.hbm_to_vmem [thread:$0]  %s1, 256, %s26, [#allocation7]
    $region9: #{tpu_custom_call.1} parent=1 // pred_fallthru
      _
    // Predicated region
    $region10: #{tpu_custom_call.1} parent=1 // pred_check
      _
    $region11: #{tpu_custom_call.1} parent=1 // pred_check_branch
      %30 = sbr.rel (0) target = $region13
    $region12: #{tpu_custom_call.1} parent=1 // pred_region
      %31 = dma.done [#allocation5], 256
    $region13: #{tpu_custom_call.1} parent=1 // pred_fallthru
      _
    // Predicated region
    $region14: #{tpu_custom_call.1} parent=1 // pred_check
      _
    $region15: #{tpu_custom_call.1} parent=1 // pred_check_branch
      %33 = sbr.rel (0) target = $region17
    $region16: #{tpu_custom_call.1} parent=1 // pred_region
      %34 = dma.done [#allocation7], 256
    $region17: #{tpu_custom_call.1} parent=1 // pred_fallthru
      _
    %p35 = scmp.eq.s32.totalorder 0, 0
    // Predicated region
    $region18: #{tpu_custom_call.1} parent=1 // pred_check
      %p36 = pneg %p35
    $region19: #{tpu_custom_call.1} parent=1 // pred_check_branch
      %38 = sbr.rel (%p36) target = $region21
    $region20: #{tpu_custom_call.1} parent=1 // pred_region
      %vm39 = vcmask 1024
      %40 = vst.msk [vmem:[#allocation2] sm:$0x3] %vm39, 0.0
      %41 = vst.msk [vmem:[#allocation3] sm:$0x3] %vm39, 0.0
    $region21: #{tpu_custom_call.1} parent=1 // pred_fallthru
      _
    %v42 = vld [vmem:[#allocation4] sm:$0xff]
    %v43 = vld [vmem:[#allocation4 + $0x8] sm:$0xff]
    %v44 = vld [vmem:[#allocation6] sm:$0xff]
    %v45 = vld [vmem:[#allocation6 + $0x8] sm:$0xff]
    %v46 = vxor.u32 %v42, 2147483648
    %v47 = vxor.u32 %v43, 2147483648
    %v48 = vmul.f32 %v46, 1.442695
    %v49 = vpow.pop %v48
    %v50 = vmul.f32 %v47, 1.442695
    %v51 = vpow.pop %v50
    %v52 = vadd.f32 %v49, 1.0
    %v53 = vadd.f32 %v51, 1.0
    %v54 = vrcp.pop %v52
    %v55 = vmul.f32 1.0, %v54
    %v56 = vrcp.pop %v53
    %v57 = vmul.f32 1.0, %v56
    %v58 = vld [vmem:[#allocation2] sm:$0x3]
    %v59 = vmul.f32 %v55, %v44
    %v60 = vmul.f32 %v57, %v45
    %v63 = vcombine.high %v59, %v59
    %v65 = vunpack.c.l.s4 1983009808
    %v66 = vunpack.c.0.s8 %v65
    %v67 = vlaneseq
    %v68 = vshrl.u32 %v67, 7
    %v69 = vsub.s32 %v66, %v68
    %v70 = vrot.slane %v59, %v69
    %v72 = vunpack.c.l.s4 1983009808
    %v73 = vunpack.c.0.s8 %v72
    %v74 = vlaneseq
    %v75 = vshrl.u32 %v74, 7
    %v76 = vsub.s32 %v73, %v75
    %v77 = vrot.slane %v63, %v76
    %v78 = vcombine.high %v70, %v70
    %v79 = vcombine.high %v77, %v77
    %v80 = vcombine.high %v60, %v60
    %v82 = vunpack.c.l.s4 1983009808
    %v83 = vunpack.c.0.s8 %v82
    %v84 = vlaneseq
    %v85 = vshrl.u32 %v84, 7
    %v86 = vsub.s32 %v83, %v85
    %v87 = vrot.slane %v60, %v86
    %v89 = vunpack.c.l.s4 1983009808
    %v90 = vunpack.c.0.s8 %v89
    %v91 = vlaneseq
    %v92 = vshrl.u32 %v91, 7
    %v93 = vsub.s32 %v90, %v92
    %v94 = vrot.slane %v80, %v93
    %v95 = vcombine.high %v87, %v87
    %v96 = vcombine.high %v94, %v94
    %vm105 = vcmask 1041408
    %v106 = vsel %vm105, %v70, 0.0
    %v107 = vsel %vm105, %v78, 0.0
    %v108 = vadd.f32 %v106, %v107
    %v109 = vsel %vm105, %v77, 0.0
    %v110 = vadd.f32 %v108, %v109
    %v111 = vsel %vm105, %v79, 0.0
    %v112 = vadd.f32 %v110, %v111
    %v113 = vsel %vm105, %v87, 0.0
    %v114 = vadd.f32 %v112, %v113
    %v115 = vsel %vm105, %v95, 0.0
    %v116 = vadd.f32 %v114, %v115
    %v117 = vsel %vm105, %v94, 0.0
    %v118 = vadd.f32 %v116, %v117
    %v119 = vsel %vm105, %v96, 0.0
    %v120 = vadd.f32 %v118, %v119
    %121 = vadd.xlane.f32.xlu0 %v120
    %v122 = vpop.xlane.xlu0 %121
    %v123 = vadd.f32 %v58, %v122
    %vm124 = vcmask 1024
    %125 = vst.msk [vmem:[#allocation2] sm:$0x3] %vm124, %v123
    %v126 = vld [vmem:[#allocation3] sm:$0x3]
    %v127 = vadd.f32 %v55, %v44
    %v128 = vadd.f32 %v57, %v45
    %v131 = vcombine.high %v127, %v127
    %v133 = vunpack.c.l.s4 1983009808
    %v134 = vunpack.c.0.s8 %v133
    %v135 = vlaneseq
    %v136 = vshrl.u32 %v135, 7
    %v137 = vsub.s32 %v134, %v136
    %v138 = vrot.slane %v127, %v137
    %v140 = vunpack.c.l.s4 1983009808
    %v141 = vunpack.c.0.s8 %v140
    %v142 = vlaneseq
    %v143 = vshrl.u32 %v142, 7
    %v144 = vsub.s32 %v141, %v143
    %v145 = vrot.slane %v131, %v144
    %v146 = vcombine.high %v138, %v138
    %v147 = vcombine.high %v145, %v145
    %v148 = vcombine.high %v128, %v128
    %v150 = vunpack.c.l.s4 1983009808
    %v151 = vunpack.c.0.s8 %v150
    %v152 = vlaneseq
    %v153 = vshrl.u32 %v152, 7
    %v154 = vsub.s32 %v151, %v153
    %v155 = vrot.slane %v128, %v154
    %v157 = vunpack.c.l.s4 1983009808
    %v158 = vunpack.c.0.s8 %v157
    %v159 = vlaneseq
    %v160 = vshrl.u32 %v159, 7
    %v161 = vsub.s32 %v158, %v160
    %v162 = vrot.slane %v148, %v161
    %v163 = vcombine.high %v155, %v155
    %v164 = vcombine.high %v162, %v162
    %v173 = vsel %vm105, %v138, 0.0
    %v174 = vsel %vm105, %v146, 0.0
    %v175 = vadd.f32 %v173, %v174
    %v176 = vsel %vm105, %v145, 0.0
    %v177 = vadd.f32 %v175, %v176
    %v178 = vsel %vm105, %v147, 0.0
    %v179 = vadd.f32 %v177, %v178
    %v180 = vsel %vm105, %v155, 0.0
    %v181 = vadd.f32 %v179, %v180
    %v182 = vsel %vm105, %v163, 0.0
    %v183 = vadd.f32 %v181, %v182
    %v184 = vsel %vm105, %v162, 0.0
    %v185 = vadd.f32 %v183, %v184
    %v186 = vsel %vm105, %v164, 0.0
    %v187 = vadd.f32 %v185, %v186
    %188 = vadd.xlane.f32.xlu0 %v187
    %v189 = vpop.xlane.xlu0 %188
    %v190 = vadd.f32 %v126, %v189
    %191 = vst.msk [vmem:[#allocation3] sm:$0x3] %vm124, %v190
    // Predicated region
    $region22: #{tpu_custom_call.1} parent=1 // pred_check
      %p192 = pneg %p35
    $region23: #{tpu_custom_call.1} parent=1 // pred_check_branch
      %194 = sbr.rel (%p192) target = $region25
    $region24: #{tpu_custom_call.1} parent=1 // pred_region
      %v195 = vld [vmem:[#allocation2] sm:$0x3]
      %v196 = vld [vmem:[#allocation3] sm:$0x3]
      %v197 = vsub.f32 %v196, %v195
      %v198 = vadd.f32 %v195, 1.0
      %v199 = vadd.f32 %v197, 1.0
      %v200 = vrcp.pop %v199
      %v201 = vmul.f32 %v198, %v200
      %v202 = vsub.f32 1.0, %v201
      %203 = vst.msk [vmem:[%s2] sm:$0x3] %vm124, %v202
    $region25: #{tpu_custom_call.1} parent=1 // pred_fallthru
      _
    // Predicated region
    $region26: #{tpu_custom_call.1} parent=1 // pred_check
      _
    $region27: #{tpu_custom_call.1} parent=1 // pred_check_branch
      %205 = sbr.rel (0) target = $region29
    $region28: #{tpu_custom_call.1} parent=1 // pred_region
      _
    $region29: #{tpu_custom_call.1} parent=1 // pred_fallthru
      _
    // Predicated region
    $region30: #{tpu_custom_call.1} parent=1 // pred_check
      _
    $region31: #{tpu_custom_call.1} parent=1 // pred_check_branch
      %207 = sbr.rel (0) target = $region33
    $region32: #{tpu_custom_call.1} parent=1 // pred_region
      _
    $region33: #{tpu_custom_call.1} parent=1 // pred_fallthru
      _
    %208 = vsyncpa [#allocation5], 1
    %209 = vsyncpa [#allocation7], 1

</llo_original>
